<compile_context>
chip_gen: v6e
topology: v6e:2x2x1
jax: 0.10.0
libtpu: 0.0.40
codegen_flags: <defaults>
</compile_context>

<pallas_src>
import functools

import jax
import jax.numpy as jnp
from jax.experimental import pallas as pl
from jax.experimental.pallas import tpu as pltpu


def _round_up(x, m):
    return ((x + m - 1) // m) * m


def _vmem_capacity_bytes():
    """Physical VMEM per TensorCore; conservative 64 MiB default if unknown."""
    try:
        info = pltpu.get_tpu_info()
        for name in ("vmem_capacity_bytes", "vmem_bytes", "vmem_size_bytes"):
            v = getattr(info, name, None)
            if v:
                return int(v)
    except Exception:
        pass
    return 64 * 1024 * 1024


# --------------------------------------------------------------------------- #
# Fused single-pass kernel: whole (R, S) tensor VMEM resident.
#   p_ref is the (R, R) "same channel" indicator matrix, so  p @ row_stat
#   performs the per-channel reduction AND the broadcast back to rows in one
#   tiny MXU matmul (no in-kernel reshapes).
# --------------------------------------------------------------------------- #
def _bn_fused_kernel(x_ref, p_ref, g_ref, b_ref, o_ref, *, count, eps):
    x = x_ref[...].astype(jnp.float32)                       # (R, S)
    inv_n = jnp.float32(1.0 / count)
    row_sum = jnp.sum(x, axis=1, keepdims=True)              # (R, 1)
    mean = jnp.dot(p_ref[...], row_sum,
                   preferred_element_type=jnp.float32) * inv_n
    xc = x - mean                                            # mean-centered
    row_sq = jnp.sum(xc * xc, axis=1, keepdims=True)
    var = jnp.dot(p_ref[...], row_sq,
                  preferred_element_type=jnp.float32) * inv_n
    scale = g_ref[...] * jax.lax.rsqrt(var + eps)
    o_ref[...] = (xc * scale + b_ref[...]).astype(o_ref.dtype)


# --------------------------------------------------------------------------- #
# Streaming pass 1: per-row (= per (n, c)) sum / sum-of-squares partials.
# Grid = (P spatial segments [parallel], row tiles [parallel], spatial tiles
# within segment [arbitrary, accumulated]).  Output (P, R, 1) partials.
# --------------------------------------------------------------------------- #
def _bn_stats_kernel(x_ref, sum_ref, sq_ref, *, s_total, ts, mask_tail):
    s = pl.program_id(2)

    @pl.when(s == 0)
    def _():
        sum_ref[...] = jnp.zeros_like(sum_ref)
        sq_ref[...] = jnp.zeros_like(sq_ref)

    x = x_ref[...].astype(jnp.float32)
    if mask_tail:
        start = (pl.program_id(0) * pl.num_programs(2) + s) * ts
        lane = jax.lax.broadcasted_iota(jnp.int32, x.shape, 1)
        x = jnp.where(start + lane < s_total, x, 0.0)
    sum_ref[...] += jnp.sum(x, axis=1, keepdims=True)
    sq_ref[...] += jnp.sum(x * x, axis=1, keepdims=True)


# --------------------------------------------------------------------------- #
# Streaming pass 2: per-row affine apply  y = x * scale + shift  (mem-bound).
# --------------------------------------------------------------------------- #
def _bn_apply_kernel(x_ref, scale_ref, shift_ref, o_ref):
    x = x_ref[...].astype(jnp.float32)
    o_ref[...] = (x * scale_ref[...] + shift_ref[...]).astype(o_ref.dtype)


def _streaming_tiles(R, S, block_bytes):
    """Pick (tr, ts) for ~block_bytes f32 blocks; no divisibility required."""
    ts_cap = max(128, (block_bytes // (8 * 4)) // 128 * 128)
    ts = min(_round_up(S, 128), ts_cap)
    tr_cap = max(8, (block_bytes // (ts * 4)) // 8 * 8)
    tr = R if R < 8 else min((R // 8) * 8, tr_cap)
    return tr, ts


def batch_norm_3d(x, gamma, beta, eps=1e-5, force_streaming=False,
                  block_bytes=None):
    """Training-mode BatchNorm3d forward.  x: (N, C, D, H, W)."""
    N, C, D, H, W = x.shape
    R = N * C
    S = D * H * W
    x2 = x.reshape(R, S)                       # lane-dense view, no data movement
    count = N * S

    gamma_f = gamma.astype(jnp.float32)
    beta_f = beta.astype(jnp.float32)

    vmem_cap = _vmem_capacity_bytes()

    # ------------- fused single-pass path (small / medium tensors) -----------
    r_pad = _round_up(R, 8)
    s_pad = _round_up(S, 128)
    fused_need = 3 * r_pad * s_pad * 4 + r_pad * _round_up(R, 128) * 4 + 2 * 2**20
    use_fused = (not force_streaming) and R <= 1024 and \
        fused_need <= int(0.6 * vmem_cap)

    if use_fused:
        chan_id = jnp.tile(jnp.arange(C, dtype=jnp.int32), N)        # row -> channel
        pmat = (chan_id[:, None] == chan_id[None, :]).astype(jnp.float32)
        gamma_r = jnp.tile(gamma_f, N).reshape(R, 1)
        beta_r = jnp.tile(beta_f, N).reshape(R, 1)
        vmem_limit = min(int(0.8 * vmem_cap),
                         max(fused_need + 8 * 2**20, 32 * 2**20))
        vm = pltpu.MemorySpace.VMEM
        y2 = pl.pallas_call(
            functools.partial(_bn_fused_kernel, count=count, eps=eps),
            out_shape=jax.ShapeDtypeStruct((R, S), x.dtype),
            in_specs=[pl.BlockSpec(memory_space=vm)] * 4,
            out_specs=pl.BlockSpec(memory_space=vm),
            compiler_params=pltpu.CompilerParams(vmem_limit_bytes=vmem_limit),
        )(x2, pmat, gamma_r, beta_r)
        return y2.reshape(N, C, D, H, W)

    # ------------- streaming two-pass path (large tensors) -------------------
    if block_bytes is None:
        block_bytes = 8 * 2**20 if vmem_cap >= 96 * 2**20 else 6 * 2**20
    tr, ts = _streaming_tiles(R, S, block_bytes)
    n_r = pl.cdiv(R, tr)
    n_s = pl.cdiv(S, ts)
    vmem_limit = min(int(0.8 * vmem_cap), 4 * block_bytes + 8 * 2**20)
    vmem_limit = max(vmem_limit, 32 * 2**20)

    # Spatial-segment split so there are >= 2 "parallel" tiles even when N*C is
    # tiny (keeps both v7x TensorCores busy during the reduction pass).
    P = 1
    if n_r < 2 and n_s >= 2:
        for d in range(min(8, n_s), 1, -1):
            if n_s % d == 0:
                P = d
                break
    n_s_per_p = n_s // P

    # ---- pass 1: per-row partial sums / sums-of-squares ---------------------
    part_sums, part_sqs = pl.pallas_call(
        functools.partial(_bn_stats_kernel, s_total=S, ts=ts,
                          mask_tail=(S % ts != 0)),
        out_shape=(jax.ShapeDtypeStruct((P, R, 1), jnp.float32),
                   jax.ShapeDtypeStruct((P, R, 1), jnp.float32)),
        grid=(P, n_r, n_s_per_p),
        in_specs=[pl.BlockSpec((tr, ts),
                               lambda p, r, s: (r, p * n_s_per_p + s))],
        out_specs=(pl.BlockSpec((None, tr, 1), lambda p, r, s: (p, r, 0)),
                   pl.BlockSpec((None, tr, 1), lambda p, r, s: (p, r, 0))),
        compiler_params=pltpu.CompilerParams(
            dimension_semantics=("parallel", "parallel", "arbitrary"),
            vmem_limit_bytes=vmem_limit),
    )(x2)

    # ---- tiny per-channel combine + affine folding (plain JAX, O(N*C)) ------
    sum_c = part_sums.sum(axis=0).reshape(N, C).sum(axis=0)
    sq_c = part_sqs.sum(axis=0).reshape(N, C).sum(axis=0)
    cnt = jnp.float32(count)
    mean = sum_c / cnt
    # TODO(synk): E[x^2]-E[x]^2 can lose precision when |mean| >> std; a
    # shifted / Welford-style streaming accumulation would be more robust.
    var = jnp.maximum(sq_c / cnt - mean * mean, 0.0)        # biased variance
    scale_c = gamma_f * jax.lax.rsqrt(var + eps)
    shift_c = beta_f - mean * scale_c
    scale_r = jnp.tile(scale_c, N).reshape(R, 1)            # row r -> channel r % C
    shift_r = jnp.tile(shift_c, N).reshape(R, 1)

    # ---- pass 2: normalize + affine (single read + single write) ------------
    y2 = pl.pallas_call(
        _bn_apply_kernel,
        out_shape=jax.ShapeDtypeStruct((R, S), x.dtype),
        grid=(n_r, n_s),
        in_specs=[pl.BlockSpec((tr, ts), lambda r, s: (r, s)),
                  pl.BlockSpec((tr, 1), lambda r, s: (r, 0)),
                  pl.BlockSpec((tr, 1), lambda r, s: (r, 0))],
        out_specs=pl.BlockSpec((tr, ts), lambda r, s: (r, s)),
        compiler_params=pltpu.CompilerParams(
            dimension_semantics=("parallel", "parallel"),
            vmem_limit_bytes=vmem_limit),
    )(x2, scale_r, shift_r)

    return y2.reshape(N, C, D, H, W)


def _reference_bn(x, gamma, beta, eps=1e-5):
    mean = jnp.mean(x, axis=(0, 2, 3, 4), keepdims=True)
    var = jnp.var(x, axis=(0, 2, 3, 4), keepdims=True)      # biased
    g = gamma.reshape(1, -1, 1, 1, 1)
    b = beta.reshape(1, -1, 1, 1, 1)
    return (x - mean) * jax.lax.rsqrt(var + eps) * g + b


if __name__ == "__main__":
    key = jax.random.PRNGKey(0)

    # (shape NCDHW, force_streaming, block_bytes override)
    cases = [
        ((2, 4, 16, 16, 16), False, None),       # fused single-pass path
        ((2, 4, 16, 32, 64), False, None),       # fused, larger spatial
        ((2, 4, 16, 32, 64), True, None),        # streaming path, single tile
        ((2, 4, 16, 32, 64), True, 64 * 1024),   # streaming, multi-tile + P-split
        ((2, 4, 12, 10, 11), True, None),        # streaming, ragged (non-128) S
        ((1, 3, 9, 7, 5), True, None),           # streaming, R < 8 and ragged S
    ]

    for i, (shp, force_stream, bb) in enumerate(cases):
        kx = jax.random.fold_in(key, i)
        x = jax.random.normal(kx, shp, jnp.float32) * 1.7 + 0.3
        C = shp[1]
        gamma = jnp.ones((C,), jnp.float32)      # nn.BatchNorm3d default init
        beta = jnp.zeros((C,), jnp.float32)

        fwd = jax.jit(functools.partial(batch_norm_3d, eps=1e-5,
                                        force_streaming=force_stream,
                                        block_bytes=bb))
        y = jax.block_until_ready(fwd(x, gamma, beta))
        ref = _reference_bn(x, gamma, beta)

        assert y.shape == x.shape, (y.shape, x.shape)
        assert bool(jnp.all(jnp.isfinite(y)))
        err = float(jnp.max(jnp.abs(y - ref)))
        assert err < 1e-3, f"max abs err {err} for shape {shp} (stream={force_stream})"

    print("KERNEL_OK")
</pallas_src>

<mosaic_0001>
module attributes {stable_mosaic.version = 11 : i64} {
  func.func @_bn_fused_kernel(%arg0: memref<8x4096xf32, #tpu.memory_space<vmem>>, %arg1: memref<8x8xf32, #tpu.memory_space<vmem>>, %arg2: memref<8x1xf32, #tpu.memory_space<vmem>>, %arg3: memref<8x1xf32, #tpu.memory_space<vmem>>, %arg4: memref<8x4096xf32, #tpu.memory_space<vmem>>) attributes {dimension_semantics = [], scalar_prefetch = 0 : i64, scratch_operands = 0 : i64, tpu.core_type = #tpu.core_type<tc>} {
    %c0 = arith.constant 0 : index
    %c0_0 = arith.constant 0 : index
    %0 = vector.load %arg0[%c0, %c0_0] : memref<8x4096xf32, #tpu.memory_space<vmem>>, vector<8x4096xf32>
    %cst = arith.constant dense<0.000000e+00> : vector<8xf32>
    %1 = vector.multi_reduction <add>, %0, %cst [1] : vector<8x4096xf32> to vector<8xf32>
    %2 = vector.shape_cast %1 : vector<8xf32> to vector<8x1xf32>
    %c0_1 = arith.constant 0 : index
    %c0_2 = arith.constant 0 : index
    %3 = vector.load %arg1[%c0_1, %c0_2] : memref<8x8xf32, #tpu.memory_space<vmem>>, vector<8x8xf32>
    %cst_3 = arith.constant dense<0.000000e+00> : vector<8x1xf32>
    %4 = tpu.matmul %3, %2, %cst_3 {dimension_numbers = #tpu.dot_dimension_numbers<[1], [0], [0], [1], [0, 0, 1, 1], [], []>} : vector<8x8xf32>, vector<8x1xf32>, vector<8x1xf32> -> vector<8x1xf32>
    %cst_4 = arith.constant 1.22070313E-4 : f32
    %5 = vector.broadcast %cst_4 : f32 to vector<8x1xf32>
    %6 = arith.mulf %4, %5 : vector<8x1xf32>
    %7 = vector.broadcast %6 : vector<8x1xf32> to vector<8x4096xf32>
    %8 = arith.subf %0, %7 : vector<8x4096xf32>
    %9 = arith.mulf %8, %8 : vector<8x4096xf32>
    %cst_5 = arith.constant dense<0.000000e+00> : vector<8xf32>
    %10 = vector.multi_reduction <add>, %9, %cst_5 [1] : vector<8x4096xf32> to vector<8xf32>
    %11 = vector.shape_cast %10 : vector<8xf32> to vector<8x1xf32>
    %c0_6 = arith.constant 0 : index
    %c0_7 = arith.constant 0 : index
    %12 = vector.load %arg1[%c0_6, %c0_7] : memref<8x8xf32, #tpu.memory_space<vmem>>, vector<8x8xf32>
    %cst_8 = arith.constant dense<0.000000e+00> : vector<8x1xf32>
    %13 = tpu.matmul %12, %11, %cst_8 {dimension_numbers = #tpu.dot_dimension_numbers<[1], [0], [0], [1], [0, 0, 1, 1], [], []>} : vector<8x8xf32>, vector<8x1xf32>, vector<8x1xf32> -> vector<8x1xf32>
    %cst_9 = arith.constant 1.22070313E-4 : f32
    %14 = vector.broadcast %cst_9 : f32 to vector<8x1xf32>
    %15 = arith.mulf %13, %14 : vector<8x1xf32>
    %c0_10 = arith.constant 0 : index
    %c0_11 = arith.constant 0 : index
    %16 = vector.load %arg2[%c0_10, %c0_11] : memref<8x1xf32, #tpu.memory_space<vmem>>, vector<8x1xf32>
    %cst_12 = arith.constant 9.99999974E-6 : f32
    %17 = vector.broadcast %cst_12 : f32 to vector<8x1xf32>
    %18 = arith.addf %15, %17 : vector<8x1xf32>
    %19 = math.rsqrt %18 : vector<8x1xf32>
    %20 = arith.mulf %16, %19 : vector<8x1xf32>
    %21 = vector.broadcast %20 : vector<8x1xf32> to vector<8x4096xf32>
    %22 = arith.mulf %8, %21 : vector<8x4096xf32>
    %c0_13 = arith.constant 0 : index
    %c0_14 = arith.constant 0 : index
    %23 = vector.load %arg3[%c0_13, %c0_14] : memref<8x1xf32, #tpu.memory_space<vmem>>, vector<8x1xf32>
    %24 = vector.broadcast %23 : vector<8x1xf32> to vector<8x4096xf32>
    %25 = arith.addf %22, %24 : vector<8x4096xf32>
    %c0_15 = arith.constant 0 : index
    %c0_16 = arith.constant 0 : index
    %26 = vector.load %arg4[%c0_15, %c0_16] : memref<8x4096xf32, #tpu.memory_space<vmem>>, vector<8x4096xf32>
    tpu.vector_store %arg4[%c0_15, %c0_16], %25 {strides = array<i32>} : memref<8x4096xf32, #tpu.memory_space<vmem>>, vector<8x4096xf32>,
    return
  }
}

</mosaic_0001>

<llo_original>
// kernel: tile.25
$region0: #{tile.25}
  #allocation0 [shape = 's32[1]{0}', space=sflag, size = 0x4, scoped, tag = 'scoped memory for tile.25']
  %s0 = inlined_call_operand.vmem [shape: f32[4], index: 0, kind: input, shape index: {}]
  %s1 = inlined_call_operand.vmem [shape: f32[2,4], index: 1, kind: output, shape index: {}]
  // Predicated region
  $region2: #{tile.25} parent=0 // pred_check
    _
  $region3: #{tile.25} parent=0 // pred_check_branch
    %3 = sbr.rel (0) target = $region5
  $region4: #{tile.25} parent=0 // pred_region
    _
  $region5: #{tile.25} parent=0 // pred_fallthru
    _
  %v4 = vld [vmem:[%s0] ss:$0 sm:$0xff]
  %5 = vst [vmem:[%s1] sm:$0x3] %v4

// kernel: tile.1
$region0: #{tile.1}
  %s0 = inlined_call_operand.vmem [shape: f32[2,4], index: 0, kind: input, shape index: {}]
  %s1 = inlined_call_operand.vmem [shape: f32[8,1], index: 1, kind: output, shape index: {}]
  $region1: #{tile.1} parent=0
    #allocation0 [shape = 'u8[4096]{0}', space=vmem, size = 0x1000, scoped, tag = 'scoped mem for input reshape']
    %s3 = sshll.u32 1, 2
    %s4 = ssub.s32 %s3, 1
    %v5 = vld [vmem:[%s0] sm:%s4]
    %6 = vst [vmem:[#allocation0] sm:%s4] %v5
    %v7 = vld [vmem:[#allocation0] sm:$0x3]
    %vm8 = vcmask 7168
    %9 = vst.msk [vmem:[%s1] ss:$4 sm:$0x3] %vm8, %v7
    %v10 = vld [vmem:[#allocation0] sm:$0x3]
    %11 = vrot.lane.b32.xlu0 %v10, 127
    %v12 = vpop.permute.xlu0 %11
    %vm13 = vcmask 7168
    %s14 = scalar_lea.vmem %s1, 1
    %15 = vst.msk [vmem:[%s14] ss:$4 sm:$0x3] %vm13, %v12
    %v16 = vld [vmem:[#allocation0] sm:$0x3]
    %17 = vrot.lane.b32.xlu0 %v16, 126
    %v18 = vpop.permute.xlu0 %17
    %vm19 = vcmask 7168
    %s20 = scalar_lea.vmem %s1, 2
    %21 = vst.msk [vmem:[%s20] ss:$4 sm:$0x3] %vm19, %v18
    %v22 = vld [vmem:[#allocation0] sm:$0x3]
    %23 = vrot.lane.b32.xlu0 %v22, 125
    %v24 = vpop.permute.xlu0 %23
    %vm25 = vcmask 7168
    %s26 = scalar_lea.vmem %s1, 3
    %27 = vst.msk [vmem:[%s26] ss:$4 sm:$0x3] %vm25, %v24

// kernel: eq.8
$region0: #{eq.8}
  %s0 = inlined_call_operand.vmem [shape: s32[2,4], index: 0, kind: input, shape index: {}]
  %s1 = inlined_call_operand.vmem [shape: s32[8], index: 1, kind: output, shape index: {}]
  $region1: #{eq.8} parent=0
    #allocation0 [shape = 'u8[4096]{0}', space=vmem, size = 0x1000, scoped, tag = 'scoped mem for output reshape']
    #allocation1 [shape = 'u8[4096]{0}', space=vmem, size = 0x1000, scoped, tag = 'scoped mem for input reshape']
    %s3 = sshll.u32 1, 2
    %s4 = ssub.s32 %s3, 1
    %v5 = vld [vmem:[%s0] sm:%s4]
    %6 = vst [vmem:[#allocation1] sm:%s4] %v5
    %v7 = vld [vmem:[#allocation1] sm:$0x1]
    %vm8 = vcmask 31744
    %9 = vst.msk [vmem:[#allocation0] sm:$0x1] %vm8, %v7
    %s10 = scalar_lea.vmem [#allocation1], 1
    %v11 = vld [vmem:[%s10] sm:$0x1]
    %12 = vrot.lane.b32.xlu0 %v11, 4
    %v13 = vpop.permute.xlu0 %12
    %vm14 = vcmask 64544
    %15 = vst.msk [vmem:[#allocation0] sm:$0x1] %vm14, %v13
    %s17 = sshll.u32 1, 1
    %s18 = ssub.s32 %s17, 1
    %v20 = vld [vmem:[#allocation0] sm:%s18]
    %s21 = sshll.u32 1, 1
    %s22 = ssub.s32 %s21, 1
    %23 = vst [vmem:[%s1] sm:%s22] %v20

// kernel: batch_norm_3d.1
$region0: #{batch_norm_3d.1}
  #allocation0 [shape = 'u32[]', space=smem, size = 0x4, offset = 0x4, fixed_abs, tag = 'smem constant byte address 0x4 - core index']
  #allocation1 [shape = 'u32[144,128]{1,0:T(1,128)}', space=vmem, size = 0x12000, scoped, tag = 'internal scratch']
  %s0 = inlined_call_operand.vmem [shape: f32[8,4096], index: 0, kind: input, shape index: {}]
  %s1 = inlined_call_operand.vmem [shape: f32[8,8], index: 1, kind: input, shape index: {}]
  %s2 = inlined_call_operand.vmem [shape: f32[8,1], index: 2, kind: input, shape index: {}]
  %s3 = inlined_call_operand.vmem [shape: f32[8,1], index: 3, kind: input, shape index: {}]
  %s4 = inlined_call_operand.vmem [shape: f32[8,4096], index: 4, kind: output, shape index: {}]
  %s5 = sld [smem:[#allocation0]]
  $region26: #{batch_norm_3d.1} parent=0
    _
  %s7 = ssub.s32 1, %s5
  %s8 = scalar_select 0, %s7, %s5
  // Predicated region
  $region2: #{batch_norm_3d.1} parent=0 // pred_check
    _
  $region3: #{batch_norm_3d.1} parent=0 // pred_check_branch
    %10 = sbr.rel (0) target = $region5
  $region4: #{batch_norm_3d.1} parent=0 // pred_region
    _
  $region5: #{batch_norm_3d.1} parent=0 // pred_fallthru
    _
  // Predicated region
  $region6: #{batch_norm_3d.1} parent=0 // pred_check
    _
  $region7: #{batch_norm_3d.1} parent=0 // pred_check_branch
    %12 = sbr.rel (0) target = $region9
  $region8: #{batch_norm_3d.1} parent=0 // pred_region
    _
  $region9: #{batch_norm_3d.1} parent=0 // pred_fallthru
    _
  // Predicated region
  $region10: #{batch_norm_3d.1} parent=0 // pred_check
    _
  $region11: #{batch_norm_3d.1} parent=0 // pred_check_branch
    %14 = sbr.rel (0) target = $region13
  $region12: #{batch_norm_3d.1} parent=0 // pred_region
    _
  $region13: #{batch_norm_3d.1} parent=0 // pred_fallthru
    _
  // Predicated region
  $region14: #{batch_norm_3d.1} parent=0 // pred_check
    _
  $region15: #{batch_norm_3d.1} parent=0 // pred_check_branch
    %16 = sbr.rel (0) target = $region17
  $region16: #{batch_norm_3d.1} parent=0 // pred_region
    _
  $region17: #{batch_norm_3d.1} parent=0 // pred_fallthru
    _
  %v17 = vld [vmem:[%s0] sm:$0xff]
  %v18 = vld [vmem:[%s0 + $0x8] sm:$0xff]
  %v19 = vld [vmem:[%s0 + $0x10] sm:$0xff]
  %v20 = vld [vmem:[%s0 + $0x18] sm:$0xff]
  %v21 = vld [vmem:[%s0 + $0x20] sm:$0xff]
  %v22 = vld [vmem:[%s0 + $0x28] sm:$0xff]
  %v23 = vld [vmem:[%s0 + $0x30] sm:$0xff]
  %v24 = vld [vmem:[%s0 + $0x38] sm:$0xff]
  %v25 = vld [vmem:[%s0 + $0x40] sm:$0xff]
  %v26 = vld [vmem:[%s0 + $0x48] sm:$0xff]
  %v27 = vld [vmem:[%s0 + $0x50] sm:$0xff]
  %v28 = vld [vmem:[%s0 + $0x58] sm:$0xff]
  %v29 = vld [vmem:[%s0 + $0x60] sm:$0xff]
  %v30 = vld [vmem:[%s0 + $0x68] sm:$0xff]
  %v31 = vld [vmem:[%s0 + $0x70] sm:$0xff]
  %v32 = vld [vmem:[%s0 + $0x78] sm:$0xff]
  %v33 = vld [vmem:[%s0 + $0x80] sm:$0xff]
  %v34 = vld [vmem:[%s0 + $0x88] sm:$0xff]
  %v35 = vld [vmem:[%s0 + $0x90] sm:$0xff]
  %v36 = vld [vmem:[%s0 + $0x98] sm:$0xff]
  %v37 = vld [vmem:[%s0 + $0xa0] sm:$0xff]
  %v38 = vld [vmem:[%s0 + $0xa8] sm:$0xff]
  %v39 = vld [vmem:[%s0 + $0xb0] sm:$0xff]
  %v40 = vld [vmem:[%s0 + $0xb8] sm:$0xff]
  %v41 = vld [vmem:[%s0 + $0xc0] sm:$0xff]
  %v42 = vld [vmem:[%s0 + $0xc8] sm:$0xff]
  %v43 = vld [vmem:[%s0 + $0xd0] sm:$0xff]
  %v44 = vld [vmem:[%s0 + $0xd8] sm:$0xff]
  %v45 = vld [vmem:[%s0 + $0xe0] sm:$0xff]
  %v46 = vld [vmem:[%s0 + $0xe8] sm:$0xff]
  %v47 = vld [vmem:[%s0 + $0xf0] sm:$0xff]
  %v48 = vld [vmem:[%s0 + $0xf8] sm:$0xff]
  %v49 = vadd.f32 %v17, %v18
  %v50 = vadd.f32 %v49, %v19
  %v51 = vadd.f32 %v50, %v20
  %v52 = vadd.f32 %v51, %v21
  %v53 = vadd.f32 %v52, %v22
  %v54 = vadd.f32 %v53, %v23
  %v55 = vadd.f32 %v54, %v24
  %v56 = vadd.f32 %v55, %v25
  %v57 = vadd.f32 %v56, %v26
  %v58 = vadd.f32 %v57, %v27
  %v59 = vadd.f32 %v58, %v28
  %v60 = vadd.f32 %v59, %v29
  %v61 = vadd.f32 %v60, %v30
  %v62 = vadd.f32 %v61, %v31
  %v63 = vadd.f32 %v62, %v32
  %v64 = vadd.f32 %v63, %v33
  %v65 = vadd.f32 %v64, %v34
  %v66 = vadd.f32 %v65, %v35
  %v67 = vadd.f32 %v66, %v36
  %v68 = vadd.f32 %v67, %v37
  %v69 = vadd.f32 %v68, %v38
  %v70 = vadd.f32 %v69, %v39
  %v71 = vadd.f32 %v70, %v40
  %v72 = vadd.f32 %v71, %v41
  %v73 = vadd.f32 %v72, %v42
  %v74 = vadd.f32 %v73, %v43
  %v75 = vadd.f32 %v74, %v44
  %v76 = vadd.f32 %v75, %v45
  %v77 = vadd.f32 %v76, %v46
  %v78 = vadd.f32 %v77, %v47
  %v79 = vadd.f32 %v78, %v48
  %80 = vadd.xlane.f32.xlu0 %v79
  %v81 = vpop.xlane.xlu0 %80
  %v82 = vld [vmem:[%s1] sm:$0xff]
  %vm83 = vcmask 64512
  %v85 = vsel %vm83, %v82, 0
  %87 = vmatprep.subr.mxu0 0.0
  %88 = vmatpush1.msra.mxu0 0.0
  %89 = vmatprep.subr.mxu0 0.0
  %90 = vmatpush1.msra.mxu0 0.0
  %91 = vmatprep.subr.mxu0 0.0
  %92 = vmatpush1.msra.mxu0 0.0
  %93 = vmatprep.subr.mxu0 0.0
  %94 = vmatpush1.msra.mxu0 0.0
  %95 = vmatprep.subr.mxu0 0.0
  %96 = vmatpush1.msra.mxu0 0.0
  %97 = vmatprep.subr.mxu0 0.0
  %98 = vmatpush1.msra.mxu0 0.0
  %99 = vmatprep.subr.mxu0 0.0
  %100 = vmatpush1.msra.mxu0 0.0
  %101 = vmatprep.subr.mxu0 0.0
  %102 = vmatpush1.msra.mxu0 0.0
  %103 = vmatprep.subr.mxu0 0.0
  %104 = vmatpush1.msra.mxu0 0.0
  %105 = vmatprep.subr.mxu0 0.0
  %106 = vmatpush1.msra.mxu0 0.0
  %107 = vmatprep.subr.mxu0 0.0
  %108 = vmatpush1.msra.mxu0 0.0
  %109 = vmatprep.subr.mxu0 0.0
  %110 = vmatpush1.msra.mxu0 0.0
  %111 = vmatprep.subr.mxu0 0.0
  %112 = vmatpush1.msra.mxu0 0.0
  %113 = vmatprep.subr.mxu0 0.0
  %114 = vmatpush1.msra.mxu0 0.0
  %115 = vmatprep.subr.mxu0 0.0
  %116 = vmatpush1.msra.mxu0 0.0
  %117 = vmatprep.subr.mxu0 0.0
  %118 = vmatpush1.msra.mxu0 %v81
  %119 = vmatprep.subr.mxu0 0.0
  %120 = vmatpush2.msra.mxu0 0.0
  %121 = vmatprep.subr.mxu0 0.0
  %122 = vmatpush2.msra.mxu0 0.0
  %123 = vmatprep.subr.mxu0 0.0
  %124 = vmatpush2.msra.mxu0 0.0
  %125 = vmatprep.subr.mxu0 0.0
  %126 = vmatpush2.msra.mxu0 0.0
  %127 = vmatprep.subr.mxu0 0.0
  %128 = vmatpush2.msra.mxu0 0.0
  %129 = vmatprep.subr.mxu0 0.0
  %130 = vmatpush2.msra.mxu0 0.0
  %131 = vmatprep.subr.mxu0 0.0
  %132 = vmatpush2.msra.mxu0 0.0
  %133 = vmatprep.subr.mxu0 0.0
  %134 = vmatpush2.msra.mxu0 0.0
  %135 = vmatprep.subr.mxu0 0.0
  %136 = vmatpush2.msra.mxu0 0.0
  %137 = vmatprep.subr.mxu0 0.0
  %138 = vmatpush2.msra.mxu0 0.0
  %139 = vmatprep.subr.mxu0 0.0
  %140 = vmatpush2.msra.mxu0 0.0
  %141 = vmatprep.subr.mxu0 0.0
  %142 = vmatpush2.msra.mxu0 0.0
  %143 = vmatprep.subr.mxu0 0.0
  %144 = vmatpush2.msra.mxu0 0.0
  %145 = vmatprep.subr.mxu0 0.0
  %146 = vmatpush2.msra.mxu0 0.0
  %147 = vmatprep.subr.mxu0 0.0
  %148 = vmatpush2.msra.mxu0 0.0
  %149 = vmatprep.subr.mxu0 0.0
  %150 = vmatpush2.msra.mxu0 0.0
  %151 = vmatprep.mubr.f32.mxu0 0.0
  %152 = vmatmul.mubr.f32.gmra.mxu0 %v85
  %v153 = vpop.f32.mrf.mxu0
  %v154 = vadd.f32 0.0, %v153
  %v155 = vpop.f32.mrf.mxu0
  %156 = vdwg.mxu0
  %v157 = vmul.f32 %v154, 0.00012207031
  %159 = vset.pattern.permute.xlu0 0
  %160 = vperm.xlu0 %159, %v157
  %v161 = vpop.permute.xlu0 %160
  %v163 = vsub.f32 %v17, %v161
  %v164 = vsub.f32 %v18, %v161
  %v165 = vsub.f32 %v19, %v161
  %v166 = vsub.f32 %v20, %v161
  %v167 = vsub.f32 %v21, %v161
  %v168 = vsub.f32 %v22, %v161
  %v169 = vsub.f32 %v23, %v161
  %v170 = vsub.f32 %v24, %v161
  %v171 = vsub.f32 %v25, %v161
  %v172 = vsub.f32 %v26, %v161
  %v173 = vsub.f32 %v27, %v161
  %v174 = vsub.f32 %v28, %v161
  %v175 = vsub.f32 %v29, %v161
  %v176 = vsub.f32 %v30, %v161
  %v177 = vsub.f32 %v31, %v161
  %v178 = vsub.f32 %v32, %v161
  %v179 = vsub.f32 %v33, %v161
  %v180 = vsub.f32 %v34, %v161
  %v181 = vsub.f32 %v35, %v161
  %v182 = vsub.f32 %v36, %v161
  %v183 = vsub.f32 %v37, %v161
  %v184 = vsub.f32 %v38, %v161
  %v185 = vsub.f32 %v39, %v161
  %v186 = vsub.f32 %v40, %v161
  %v187 = vsub.f32 %v41, %v161
  %v188 = vsub.f32 %v42, %v161
  %v189 = vsub.f32 %v43, %v161
  %v190 = vsub.f32 %v44, %v161
  %v191 = vsub.f32 %v45, %v161
  %v192 = vsub.f32 %v46, %v161
  %v193 = vsub.f32 %v47, %v161
  %v194 = vsub.f32 %v48, %v161
  %v195 = vmul.f32 %v163, %v163
  %v196 = vmul.f32 %v164, %v164
  %v197 = vmul.f32 %v165, %v165
  %v198 = vmul.f32 %v166, %v166
  %v199 = vmul.f32 %v167, %v167
  %v200 = vmul.f32 %v168, %v168
  %v201 = vmul.f32 %v169, %v169
  %v202 = vmul.f32 %v170, %v170
  %v203 = vmul.f32 %v171, %v171
  %v204 = vmul.f32 %v172, %v172
  %v205 = vmul.f32 %v173, %v173
  %v206 = vmul.f32 %v174, %v174
  %v207 = vmul.f32 %v175, %v175
  %v208 = vmul.f32 %v176, %v176
  %v209 = vmul.f32 %v177, %v177
  %v210 = vmul.f32 %v178, %v178
  %v211 = vmul.f32 %v179, %v179
  %v212 = vmul.f32 %v180, %v180
  %v213 = vmul.f32 %v181, %v181
  %v214 = vmul.f32 %v182, %v182
  %v215 = vmul.f32 %v183, %v183
  %v216 = vmul.f32 %v184, %v184
  %v217 = vmul.f32 %v185, %v185
  %v218 = vmul.f32 %v186, %v186
  %v219 = vmul.f32 %v187, %v187
  %v220 = vmul.f32 %v188, %v188
  %v221 = vmul.f32 %v189, %v189
  %v222 = vmul.f32 %v190, %v190
  %v223 = vmul.f32 %v191, %v191
  %v224 = vmul.f32 %v192, %v192
  %v225 = vmul.f32 %v193, %v193
  %v226 = vmul.f32 %v194, %v194
  %v227 = vadd.f32 %v195, %v196
  %v228 = vadd.f32 %v227, %v197
  %v229 = vadd.f32 %v228, %v198
  %v230 = vadd.f32 %v229, %v199
  %v231 = vadd.f32 %v230, %v200
  %v232 = vadd.f32 %v231, %v201
  %v233 = vadd.f32 %v232, %v202
  %v234 = vadd.f32 %v233, %v203
  %v235 = vadd.f32 %v234, %v204
  %v236 = vadd.f32 %v235, %v205
  %v237 = vadd.f32 %v236, %v206
  %v238 = vadd.f32 %v237, %v207
  %v239 = vadd.f32 %v238, %v208
  %v240 = vadd.f32 %v239, %v209
  %v241 = vadd.f32 %v240, %v210
  %v242 = vadd.f32 %v241, %v211
  %v243 = vadd.f32 %v242, %v212
  %v244 = vadd.f32 %v243, %v213
  %v245 = vadd.f32 %v244, %v214
  %v246 = vadd.f32 %v245, %v215
  %v247 = vadd.f32 %v246, %v216
  %v248 = vadd.f32 %v247, %v217
  %v249 = vadd.f32 %v248, %v218
  %v250 = vadd.f32 %v249, %v219
  %v251 = vadd.f32 %v250, %v220
  %v252 = vadd.f32 %v251, %v221
  %v253 = vadd.f32 %v252, %v222
  %v254 = vadd.f32 %v253, %v223
  %v255 = vadd.f32 %v254, %v224
  %v256 = vadd.f32 %v255, %v225
  %v257 = vadd.f32 %v256, %v226
  %258 = vadd.xlane.f32.xlu0 %v257
  %v259 = vpop.xlane.xlu0 %258
  %260 = vmatprep.subr.mxu0 0.0
  %261 = vmatpush1.msra.mxu0 0.0
  %262 = vmatprep.subr.mxu0 0.0
  %263 = vmatpush1.msra.mxu0 0.0
  %264 = vmatprep.subr.mxu0 0.0
  %265 = vmatpush1.msra.mxu0 0.0
  %266 = vmatprep.subr.mxu0 0.0
  %267 = vmatpush1.msra.mxu0 0.0
  %268 = vmatprep.subr.mxu0 0.0
  %269 = vmatpush1.msra.mxu0 0.0
  %270 = vmatprep.subr.mxu0 0.0
  %271 = vmatpush1.msra.mxu0 0.0
  %272 = vmatprep.subr.mxu0 0.0
  %273 = vmatpush1.msra.mxu0 0.0
  %274 = vmatprep.subr.mxu0 0.0
  %275 = vmatpush1.msra.mxu0 0.0
  %276 = vmatprep.subr.mxu0 0.0
  %277 = vmatpush1.msra.mxu0 0.0
  %278 = vmatprep.subr.mxu0 0.0
  %279 = vmatpush1.msra.mxu0 0.0
  %280 = vmatprep.subr.mxu0 0.0
  %281 = vmatpush1.msra.mxu0 0.0
  %282 = vmatprep.subr.mxu0 0.0
  %283 = vmatpush1.msra.mxu0 0.0
  %284 = vmatprep.subr.mxu0 0.0
  %285 = vmatpush1.msra.mxu0 0.0
  %286 = vmatprep.subr.mxu0 0.0
  %287 = vmatpush1.msra.mxu0 0.0
  %288 = vmatprep.subr.mxu0 0.0
  %289 = vmatpush1.msra.mxu0 0.0
  %290 = vmatprep.subr.mxu0 0.0
  %291 = vmatpush1.msra.mxu0 %v259
  %292 = vmatprep.subr.mxu0 0.0
  %293 = vmatpush2.msra.mxu0 0.0
  %294 = vmatprep.subr.mxu0 0.0
  %295 = vmatpush2.msra.mxu0 0.0
  %296 = vmatprep.subr.mxu0 0.0
  %297 = vmatpush2.msra.mxu0 0.0
  %298 = vmatprep.subr.mxu0 0.0
  %299 = vmatpush2.msra.mxu0 0.0
  %300 = vmatprep.subr.mxu0 0.0
  %301 = vmatpush2.msra.mxu0 0.0
  %302 = vmatprep.subr.mxu0 0.0
  %303 = vmatpush2.msra.mxu0 0.0
  %304 = vmatprep.subr.mxu0 0.0
  %305 = vmatpush2.msra.mxu0 0.0
  %306 = vmatprep.subr.mxu0 0.0
  %307 = vmatpush2.msra.mxu0 0.0
  %308 = vmatprep.subr.mxu0 0.0
  %309 = vmatpush2.msra.mxu0 0.0
  %310 = vmatprep.subr.mxu0 0.0
  %311 = vmatpush2.msra.mxu0 0.0
  %312 = vmatprep.subr.mxu0 0.0
  %313 = vmatpush2.msra.mxu0 0.0
  %314 = vmatprep.subr.mxu0 0.0
  %315 = vmatpush2.msra.mxu0 0.0
  %316 = vmatprep.subr.mxu0 0.0
  %317 = vmatpush2.msra.mxu0 0.0
  %318 = vmatprep.subr.mxu0 0.0
  %319 = vmatpush2.msra.mxu0 0.0
  %320 = vmatprep.subr.mxu0 0.0
  %321 = vmatpush2.msra.mxu0 0.0
  %322 = vmatprep.subr.mxu0 0.0
  %323 = vmatpush2.msra.mxu0 0.0
  %324 = vmatprep.mubr.f32.mxu0 0.0
  %325 = vmatmul.mubr.f32.gmra.mxu0 %v85
  %v326 = vpop.f32.mrf.mxu0
  %v327 = vadd.f32 0.0, %v326
  %v328 = vpop.f32.mrf.mxu0
  %329 = vdwg.mxu0
  %v330 = vmul.f32 %v327, 0.00012207031
  %v331 = vld [vmem:[%s2] sm:$0xff]
  %v332 = vadd.f32 %v330, 1e-05
  %v333 = vrsqrt.pop %v332
  %v334 = vmul.f32 %v331, %v333
  %336 = vset.pattern.permute.xlu0 0
  %337 = vperm.xlu0 %336, %v334
  %v338 = vpop.permute.xlu0 %337
  %v340 = vmul.f32 %v163, %v338
  %v341 = vmul.f32 %v164, %v338
  %v342 = vmul.f32 %v165, %v338
  %v343 = vmul.f32 %v166, %v338
  %v344 = vmul.f32 %v167, %v338
  %v345 = vmul.f32 %v168, %v338
  %v346 = vmul.f32 %v169, %v338
  %v347 = vmul.f32 %v170, %v338
  %v348 = vmul.f32 %v171, %v338
  %v349 = vmul.f32 %v172, %v338
  %v350 = vmul.f32 %v173, %v338
  %v351 = vmul.f32 %v174, %v338
  %v352 = vmul.f32 %v175, %v338
  %v353 = vmul.f32 %v176, %v338
  %v354 = vmul.f32 %v177, %v338
  %v355 = vmul.f32 %v178, %v338
  %v356 = vmul.f32 %v179, %v338
  %v357 = vmul.f32 %v180, %v338
  %v358 = vmul.f32 %v181, %v338
  %v359 = vmul.f32 %v182, %v338
  %v360 = vmul.f32 %v183, %v338
  %v361 = vmul.f32 %v184, %v338
  %v362 = vmul.f32 %v185, %v338
  %v363 = vmul.f32 %v186, %v338
  %v364 = vmul.f32 %v187, %v338
  %v365 = vmul.f32 %v188, %v338
  %v366 = vmul.f32 %v189, %v338
  %v367 = vmul.f32 %v190, %v338
  %v368 = vmul.f32 %v191, %v338
  %v369 = vmul.f32 %v192, %v338
  %v370 = vmul.f32 %v193, %v338
  %v371 = vmul.f32 %v194, %v338
  %v372 = vld [vmem:[%s3] sm:$0xff]
  %374 = vset.pattern.permute.xlu0 0
  %375 = vperm.xlu0 %374, %v372
  %v376 = vpop.permute.xlu0 %375
  %v378 = vadd.f32 %v340, %v376
  %v379 = vadd.f32 %v341, %v376
  %v380 = vadd.f32 %v342, %v376
  %v381 = vadd.f32 %v343, %v376
  %v382 = vadd.f32 %v344, %v376
  %v383 = vadd.f32 %v345, %v376
  %v384 = vadd.f32 %v346, %v376
  %v385 = vadd.f32 %v347, %v376
  %v386 = vadd.f32 %v348, %v376
  %v387 = vadd.f32 %v349, %v376
  %v388 = vadd.f32 %v350, %v376
  %v389 = vadd.f32 %v351, %v376
  %v390 = vadd.f32 %v352, %v376
  %v391 = vadd.f32 %v353, %v376
  %v392 = vadd.f32 %v354, %v376
  %v393 = vadd.f32 %v355, %v376
  %v394 = vadd.f32 %v356, %v376
  %v395 = vadd.f32 %v357, %v376
  %v396 = vadd.f32 %v358, %v376
  %v397 = vadd.f32 %v359, %v376
  %v398 = vadd.f32 %v360, %v376
  %v399 = vadd.f32 %v361, %v376
  %v400 = vadd.f32 %v362, %v376
  %v401 = vadd.f32 %v363, %v376
  %v402 = vadd.f32 %v364, %v376
  %v403 = vadd.f32 %v365, %v376
  %v404 = vadd.f32 %v366, %v376
  %v405 = vadd.f32 %v367, %v376
  %v406 = vadd.f32 %v368, %v376
  %v407 = vadd.f32 %v369, %v376
  %v408 = vadd.f32 %v370, %v376
  %v409 = vadd.f32 %v371, %v376
  %410 = vst [vmem:[%s4] sm:$0xff] %v378
  %411 = vst [vmem:[%s4 + $0x8] sm:$0xff] %v379
  %412 = vst [vmem:[%s4 + $0x10] sm:$0xff] %v380
  %413 = vst [vmem:[%s4 + $0x18] sm:$0xff] %v381
  %414 = vst [vmem:[%s4 + $0x20] sm:$0xff] %v382
  %415 = vst [vmem:[%s4 + $0x28] sm:$0xff] %v383
  %416 = vst [vmem:[%s4 + $0x30] sm:$0xff] %v384
  %417 = vst [vmem:[%s4 + $0x38] sm:$0xff] %v385
  %418 = vst [vmem:[%s4 + $0x40] sm:$0xff] %v386
  %419 = vst [vmem:[%s4 + $0x48] sm:$0xff] %v387
  %420 = vst [vmem:[%s4 + $0x50] sm:$0xff] %v388
  %421 = vst [vmem:[%s4 + $0x58] sm:$0xff] %v389
  %422 = vst [vmem:[%s4 + $0x60] sm:$0xff] %v390
  %423 = vst [vmem:[%s4 + $0x68] sm:$0xff] %v391
  %424 = vst [vmem:[%s4 + $0x70] sm:$0xff] %v392
  %425 = vst [vmem:[%s4 + $0x78] sm:$0xff] %v393
  %426 = vst [vmem:[%s4 + $0x80] sm:$0xff] %v394
  %427 = vst [vmem:[%s4 + $0x88] sm:$0xff] %v395
  %428 = vst [vmem:[%s4 + $0x90] sm:$0xff] %v396
  %429 = vst [vmem:[%s4 + $0x98] sm:$0xff] %v397
  %430 = vst [vmem:[%s4 + $0xa0] sm:$0xff] %v398
  %431 = vst [vmem:[%s4 + $0xa8] sm:$0xff] %v399
  %432 = vst [vmem:[%s4 + $0xb0] sm:$0xff] %v400
  %433 = vst [vmem:[%s4 + $0xb8] sm:$0xff] %v401
  %434 = vst [vmem:[%s4 + $0xc0] sm:$0xff] %v402
  %435 = vst [vmem:[%s4 + $0xc8] sm:$0xff] %v403
  %436 = vst [vmem:[%s4 + $0xd0] sm:$0xff] %v404
  %437 = vst [vmem:[%s4 + $0xd8] sm:$0xff] %v405
  %438 = vst [vmem:[%s4 + $0xe0] sm:$0xff] %v406
  %439 = vst [vmem:[%s4 + $0xe8] sm:$0xff] %v407
  %440 = vst [vmem:[%s4 + $0xf0] sm:$0xff] %v408
  %441 = vst [vmem:[%s4 + $0xf8] sm:$0xff] %v409
  // Predicated region
  $region18: #{batch_norm_3d.1} parent=0 // pred_check
    _
  $region19: #{batch_norm_3d.1} parent=0 // pred_check_branch
    %443 = sbr.rel (0) target = $region21
  $region20: #{batch_norm_3d.1} parent=0 // pred_region
    _
  $region21: #{batch_norm_3d.1} parent=0 // pred_fallthru
    _
  // Predicated region
  $region22: #{batch_norm_3d.1} parent=0 // pred_check
    _
  $region23: #{batch_norm_3d.1} parent=0 // pred_check_branch
    %445 = sbr.rel (0) target = $region25
  $region24: #{batch_norm_3d.1} parent=0 // pred_region
    _
  $region25: #{batch_norm_3d.1} parent=0 // pred_fallthru
    _

</llo_original>
